<compile_context>
chip_gen: v7x
topology: tpu7x:2x2x1
jax: 0.10.0
libtpu: 0.0.40
codegen_flags: <defaults>
</compile_context>

<pallas_src>
import functools
import re

import jax
import jax.numpy as jnp
from jax import lax
from jax.experimental import pallas as pl
from jax.experimental.pallas import tpu as pltpu


_HAS_BUFFERED = hasattr(pl, "Buffered")


def _tpu_generation():
    """Best-effort TPU generation (5, 6, 7, ...) from device_kind; None if unknown."""
    try:
        kind = jax.devices()[0].device_kind.lower()
    except Exception:
        return None
    m = re.search(r"v(\d+)", kind)
    return int(m.group(1)) if m else None


def _physical_vmem_bytes():
    try:
        return int(pltpu.get_tpu_info().vmem_capacity_bytes)
    except Exception:
        return 64 << 20  # conservative: v7x-sized VMEM


def _pick_block_rows(batch, block_rows=None, gen=None):
    if block_rows is not None:
        assert batch % block_rows == 0, "block_rows must divide the batch"
        return block_rows
    # v5e MXU is 4x128x128 -> 128-row tiles saturate it; v6e/v7x are 2x256x256.
    max_tr = 128 if gen == 5 else 256
    # v7x has two TensorCores: make sure the parallel grid has >= 2 steps.
    if gen == 7 and batch >= 16:
        max_tr = min(max_tr, batch // 2)
    for tr in (256, 128, 64, 32, 16, 8):
        if tr <= max_tr and tr <= batch and batch % tr == 0:
            return tr
    return batch  # small / odd batch: single row tile


def _resident_spec(shape):
    """Constant-index (resident) BlockSpec; single-buffered when supported."""
    nd = len(shape)
    index_map = lambda i: (0,) * nd
    if _HAS_BUFFERED:
        try:
            return pl.BlockSpec(shape, index_map, pipeline_mode=pl.Buffered(1))
        except TypeError:
            pass
    return pl.BlockSpec(shape, index_map)


def _supcon_kernel(xa_ref, xct_ref, lab_row_ref, lab_col_ref, loss_ref, *,
                   temperature, base_temperature, block_rows, use_bf16_exp):
    i = pl.program_id(0)
    batch = xct_ref.shape[1]

    # ---- similarity (TR, B): bf16 operands, f32 accumulation, [M,K]@[K,N] ----
    adc = jnp.dot(xa_ref[...], xct_ref[...],
                  preferred_element_type=jnp.float32)

    # ---- min-max rescale to [0, 1] -------------------------------------------
    # The /temperature and the row-max subtraction of the PyTorch module both
    # cancel under (x - min) / (max - min), so they are never materialized.
    r_max = jnp.max(adc, axis=1, keepdims=True)                     # (TR, 1)
    r_min = jnp.min(adc, axis=1, keepdims=True)
    # Exact (TR, 1) divide (cheap) instead of an approx reciprocal.
    # NOTE: same divide-by-zero hazard as the PyTorch module for a constant row.
    logits = (adc - r_min) * (jnp.float32(1.0) / (r_max - r_min))   # (TR, B)

    # ---- boolean masks: self-contrast diagonal and positive pairs -----------
    row0 = i * block_rows
    rows_g = row0 + lax.broadcasted_iota(jnp.int32, (block_rows, batch), 0)
    cols_g = lax.broadcasted_iota(jnp.int32, (block_rows, batch), 1)
    not_diag = rows_g != cols_g
    pos_mask = (lab_col_ref[...] == lab_row_ref[...]) & not_diag

    # ---- log-prob with the diagonal explicitly excluded from the denominator -
    if use_bf16_exp:
        # logits in [0,1] -> exp in [1,e]; bf16 exp (faster EUP) + f32 accumulate.
        exp_logits = jnp.exp(logits.astype(jnp.bfloat16)).astype(jnp.float32)
    else:
        exp_logits = jnp.exp(logits)
    denom = jnp.sum(jnp.where(not_diag, exp_logits, 0.0), axis=1, keepdims=True)
    log_prob = logits - jnp.log(denom)                              # (TR, B)

    pos_cnt = jnp.sum(jnp.where(pos_mask, 1.0, 0.0), axis=1, keepdims=True)
    pos_sum = jnp.sum(jnp.where(pos_mask, log_prob, 0.0), axis=1, keepdims=True)

    # (pos_cnt + 1) matches the module's `mask.sum(1) + 1` denominator.
    scale = jnp.float32(-(temperature / base_temperature))
    loss_ref[...] = scale * (pos_sum / (pos_cnt + jnp.float32(1.0)))  # (TR, 1)


def supcon_loss(features, labels, temperature=0.07, base_temperature=0.07,
                block_rows=None):
    """features: (B, D) float array (any dtype). labels: (B,) ints. -> f32 scalar."""
    # TODO(synk): only the `labels` path of SupConLoss.forward is implemented
    # (the explicit `mask=` and labels=None identity-mask branches are not wired up).
    B, D = features.shape
    gen = _tpu_generation()
    tr = _pick_block_rows(B, block_rows, gen)
    n_tiles = B // tr
    use_bf16_exp = gen is not None and gen >= 6

    # ---- hoisted one-time preprocessing (plain XLA, O(B*D)) ------------------
    x = features.astype(jnp.float32)
    norm = jnp.sqrt(jnp.sum(x * x, axis=1, keepdims=True))
    x_n = (x / jnp.maximum(norm, jnp.float32(1e-12))).astype(jnp.bfloat16)  # (B, D)
    x_nT = x_n.T                                                            # (D, B)

    labels_i32 = labels.astype(jnp.int32)
    lab_row = labels_i32.reshape(1, B)
    lab_col = labels_i32.reshape(B, 1)

    # ---- scoped-VMEM budget: explicit per-buffer estimate, clamped to HW -----
    n_res_buf = 1 if _HAS_BUFFERED else 2
    est = (n_res_buf * (B * D * 2 + B * 4)           # resident contrast (D,B) bf16 + label row
           + 2 * (tr * D * 2 + tr * 4 + tr * 4)      # double-buffered anchor tile / labels / out
           + 12 * tr * B * 4                         # in-kernel (TR,B) f32/int32 slabs
           + (2 << 20))                              # headroom
    cap = max(16 << 20, _physical_vmem_bytes() - (8 << 20))
    vmem_limit = int(min(cap, max(16 << 20, est)))

    kernel = functools.partial(
        _supcon_kernel,
        temperature=float(temperature),
        base_temperature=float(base_temperature),
        block_rows=tr,
        use_bf16_exp=use_bf16_exp,
    )
    per_row_loss = pl.pallas_call(
        kernel,
        out_shape=jax.ShapeDtypeStruct((B, 1), jnp.float32),
        grid=(n_tiles,),
        in_specs=[
            pl.BlockSpec((tr, D), lambda i: (i, 0)),   # anchor row tile (bf16, pipelined)
            _resident_spec((D, B)),                    # contrast^T, loaded once, resident
            _resident_spec((1, B)),                    # labels as a row vector, resident
            pl.BlockSpec((tr, 1), lambda i: (i, 0)),   # anchor-tile labels as a column
        ],
        out_specs=pl.BlockSpec((tr, 1), lambda i: (i, 0)),
        compiler_params=pltpu.CompilerParams(
            dimension_semantics=("parallel",),
            vmem_limit_bytes=vmem_limit,
        ),
    )(x_n, x_nT, lab_row, lab_col)
    return jnp.mean(per_row_loss)


def _supcon_loss_ref(features, labels, temperature=0.07, base_temperature=0.07):
    # Pure-JAX f32 reference mirroring the PyTorch forward exactly.
    x = features.astype(jnp.float32)
    B = x.shape[0]
    norm = jnp.sqrt(jnp.sum(x * x, axis=1, keepdims=True))
    x_n = x / jnp.maximum(norm, 1e-12)
    adc = (x_n @ x_n.T) / temperature
    logits = adc - jnp.max(adc, axis=1, keepdims=True)
    l_min = jnp.min(logits, axis=1, keepdims=True)
    l_max = jnp.max(logits, axis=1, keepdims=True)
    logits = (logits - l_min) / (l_max - l_min)
    logits_mask = 1.0 - jnp.eye(B, dtype=jnp.float32)
    lab = labels.reshape(-1, 1)
    mask = (lab == lab.T).astype(jnp.float32) * logits_mask
    exp_logits = jnp.exp(logits) * logits_mask
    log_prob = logits - jnp.log(jnp.sum(exp_logits, axis=1, keepdims=True))
    mean_log_prob_pos = jnp.sum(mask * log_prob, axis=1) / (jnp.sum(mask, axis=1) + 1.0)
    loss = -(temperature / base_temperature) * mean_log_prob_pos
    return jnp.mean(loss)


if __name__ == "__main__":
    key = jax.random.PRNGKey(0)
    kf, kl, kf2, kl2 = jax.random.split(key, 4)

    # Case 1: module-sized problem, single row tile.
    B, D = 8, 32
    features = jax.random.normal(kf, (B, D), dtype=jnp.float32)
    labels = jax.random.randint(kl, (B,), 0, 4, dtype=jnp.int32)
    loss = jax.block_until_ready(supcon_loss(features, labels))
    ref = jax.block_until_ready(_supcon_loss_ref(features, labels))
    # bf16 MXU operands (and bf16 exp on v6e/v7x) => looser tolerance than f32.
    assert jnp.allclose(loss, ref, rtol=2e-2, atol=2e-2), (loss, ref)

    # Case 2: exercise the multi-tile parallel row grid (2 row tiles).
    B2, D2 = 16, 64
    features2 = jax.random.normal(kf2, (B2, D2), dtype=jnp.float32)
    labels2 = jax.random.randint(kl2, (B2,), 0, 4, dtype=jnp.int32)
    loss2 = jax.block_until_ready(supcon_loss(features2, labels2, block_rows=8))
    ref2 = jax.block_until_ready(_supcon_loss_ref(features2, labels2))
    assert jnp.allclose(loss2, ref2, rtol=2e-2, atol=2e-2), (loss2, ref2)

    print("KERNEL_OK")
</pallas_src>

<mosaic_0001>
module attributes {stable_mosaic.version = 11 : i64} {
  func.func @_supcon_kernel(%arg0: i32, %arg1: memref<8x32xbf16, #tpu.memory_space<vmem>>, %arg2: memref<32x8xbf16, #tpu.memory_space<vmem>>, %arg3: memref<1x8xi32, #tpu.memory_space<vmem>>, %arg4: memref<8x1xi32, #tpu.memory_space<vmem>>, %arg5: memref<8x1xf32, #tpu.memory_space<vmem>>) attributes {dimension_semantics = [#tpu.dimension_semantics<parallel>], iteration_bounds = array<i64: 1>, scalar_prefetch = 0 : i64, scratch_operands = 0 : i64, tpu.core_type = #tpu.core_type<tc>, window_params = [{transform_indices = @transform_0, window_bounds = array<i64: 8, 32>}, {pipeline_mode = #tpu.pipeline_mode<synchronous>, transform_indices = @transform_1, window_bounds = array<i64: 32, 8>}, {pipeline_mode = #tpu.pipeline_mode<synchronous>, transform_indices = @transform_2, window_bounds = array<i64: 1, 8>}, {transform_indices = @transform_3, window_bounds = array<i64: 8, 1>}, {transform_indices = @transform_4, window_bounds = array<i64: 8, 1>}]} {
    %c0 = arith.constant 0 : index
    %c0_0 = arith.constant 0 : index
    %0 = vector.load %arg1[%c0, %c0_0] : memref<8x32xbf16, #tpu.memory_space<vmem>>, vector<8x32xbf16>
    %c0_1 = arith.constant 0 : index
    %c0_2 = arith.constant 0 : index
    %1 = vector.load %arg2[%c0_1, %c0_2] : memref<32x8xbf16, #tpu.memory_space<vmem>>, vector<32x8xbf16>
    %cst = arith.constant dense<0.000000e+00> : vector<8x8xf32>
    %2 = tpu.matmul %0, %1, %cst {dimension_numbers = #tpu.dot_dimension_numbers<[1], [0], [0], [1], [0, 0, 1, 1], [], []>} : vector<8x32xbf16>, vector<32x8xbf16>, vector<8x8xf32> -> vector<8x8xf32>
    %cst_3 = arith.constant dense<0xFF800000> : vector<8xf32>
    %3 = vector.multi_reduction <maximumf>, %2, %cst_3 [1] : vector<8x8xf32> to vector<8xf32>
    %4 = vector.shape_cast %3 : vector<8xf32> to vector<8x1xf32>
    %cst_4 = arith.constant dense<0x7F800000> : vector<8xf32>
    %5 = vector.multi_reduction <minimumf>, %2, %cst_4 [1] : vector<8x8xf32> to vector<8xf32>
    %6 = vector.shape_cast %5 : vector<8xf32> to vector<8x1xf32>
    %7 = vector.broadcast %6 : vector<8x1xf32> to vector<8x8xf32>
    %8 = arith.subf %2, %7 : vector<8x8xf32>
    %9 = arith.subf %4, %6 : vector<8x1xf32>
    %cst_5 = arith.constant 1.000000e+00 : f32
    %10 = vector.broadcast %cst_5 : f32 to vector<8x1xf32>
    %11 = arith.divf %10, %9 : vector<8x1xf32>
    %12 = vector.broadcast %11 : vector<8x1xf32> to vector<8x8xf32>
    %13 = arith.mulf %8, %12 : vector<8x8xf32>
    %c8_i32 = arith.constant 8 : i32
    %14 = arith.muli %arg0, %c8_i32 : i32
    %15 = tpu.iota {dimensions = array<i32: 0>} : vector<8x8xi32>
    %16 = vector.broadcast %14 : i32 to vector<8x8xi32>
    %17 = arith.addi %16, %15 : vector<8x8xi32>
    %18 = tpu.iota {dimensions = array<i32: 1>} : vector<8x8xi32>
    %19 = arith.cmpi ne, %17, %18 : vector<8x8xi32>
    %c0_6 = arith.constant 0 : index
    %c0_7 = arith.constant 0 : index
    %20 = vector.load %arg4[%c0_6, %c0_7] : memref<8x1xi32, #tpu.memory_space<vmem>>, vector<8x1xi32>
    %c0_8 = arith.constant 0 : index
    %c0_9 = arith.constant 0 : index
    %21 = vector.load %arg3[%c0_8, %c0_9] : memref<1x8xi32, #tpu.memory_space<vmem>>, vector<1x8xi32>
    %22 = vector.broadcast %20 : vector<8x1xi32> to vector<8x8xi32>
    %23 = vector.broadcast %21 : vector<1x8xi32> to vector<8x8xi32>
    %24 = arith.cmpi eq, %22, %23 : vector<8x8xi32>
    %25 = arith.andi %24, %19 : vector<8x8xi1>
    %26 = math.exp %13 : vector<8x8xf32>
    %cst_10 = arith.constant 0.000000e+00 : f32
    %27 = vector.broadcast %cst_10 : f32 to vector<8x8xf32>
    %28 = arith.select %19, %26, %27 : vector<8x8xi1>, vector<8x8xf32>
    %cst_11 = arith.constant dense<0.000000e+00> : vector<8xf32>
    %29 = vector.multi_reduction <add>, %28, %cst_11 [1] : vector<8x8xf32> to vector<8xf32>
    %30 = vector.shape_cast %29 : vector<8xf32> to vector<8x1xf32>
    %31 = math.log %30 : vector<8x1xf32>
    %32 = vector.broadcast %31 : vector<8x1xf32> to vector<8x8xf32>
    %33 = arith.subf %13, %32 : vector<8x8xf32>
    %cst_12 = arith.constant 1.000000e+00 : f32
    %cst_13 = arith.constant 0.000000e+00 : f32
    %34 = vector.broadcast %cst_12 : f32 to vector<8x8xf32>
    %35 = vector.broadcast %cst_13 : f32 to vector<8x8xf32>
    %36 = arith.select %25, %34, %35 : vector<8x8xi1>, vector<8x8xf32>
    %cst_14 = arith.constant dense<0.000000e+00> : vector<8xf32>
    %37 = vector.multi_reduction <add>, %36, %cst_14 [1] : vector<8x8xf32> to vector<8xf32>
    %38 = vector.shape_cast %37 : vector<8xf32> to vector<8x1xf32>
    %cst_15 = arith.constant 0.000000e+00 : f32
    %39 = vector.broadcast %cst_15 : f32 to vector<8x8xf32>
    %40 = arith.select %25, %33, %39 : vector<8x8xi1>, vector<8x8xf32>
    %cst_16 = arith.constant dense<0.000000e+00> : vector<8xf32>
    %41 = vector.multi_reduction <add>, %40, %cst_16 [1] : vector<8x8xf32> to vector<8xf32>
    %42 = vector.shape_cast %41 : vector<8xf32> to vector<8x1xf32>
    %cst_17 = arith.constant 1.000000e+00 : f32
    %43 = vector.broadcast %cst_17 : f32 to vector<8x1xf32>
    %44 = arith.addf %38, %43 : vector<8x1xf32>
    %45 = arith.divf %42, %44 : vector<8x1xf32>
    %cst_18 = arith.constant -1.000000e+00 : f32
    %46 = vector.broadcast %cst_18 : f32 to vector<8x1xf32>
    %47 = arith.mulf %46, %45 : vector<8x1xf32>
    %c0_19 = arith.constant 0 : index
    %c0_20 = arith.constant 0 : index
    %48 = vector.load %arg5[%c0_19, %c0_20] : memref<8x1xf32, #tpu.memory_space<vmem>>, vector<8x1xf32>
    tpu.vector_store %arg5[%c0_19, %c0_20], %47 {strides = array<i32>} : memref<8x1xf32, #tpu.memory_space<vmem>>, vector<8x1xf32>,
    return
  }
  func.func @transform_0(%arg0: i32) -> (i32, i32) {
    %c0_i32 = arith.constant 0 : i32
    %c0_i32_0 = arith.constant 0 : i32
    return %arg0, %c0_i32 : i32, i32
  }
  func.func @transform_1(%arg0: i32) -> (i32, i32) {
    %c0_i32 = arith.constant 0 : i32
    %c0_i32_0 = arith.constant 0 : i32
    %c0_i32_1 = arith.constant 0 : i32
    return %c0_i32, %c0_i32_0 : i32, i32
  }
  func.func @transform_2(%arg0: i32) -> (i32, i32) {
    %c0_i32 = arith.constant 0 : i32
    %c0_i32_0 = arith.constant 0 : i32
    %c0_i32_1 = arith.constant 0 : i32
    return %c0_i32, %c0_i32_0 : i32, i32
  }
  func.func @transform_3(%arg0: i32) -> (i32, i32) {
    %c0_i32 = arith.constant 0 : i32
    %c0_i32_0 = arith.constant 0 : i32
    return %arg0, %c0_i32 : i32, i32
  }
  func.func @transform_4(%arg0: i32) -> (i32, i32) {
    %c0_i32 = arith.constant 0 : i32
    %c0_i32_0 = arith.constant 0 : i32
    return %arg0, %c0_i32 : i32, i32
  }
}

</mosaic_0001>

<llo_original>
// kernel: tpu_custom_call.1
$region0: #{tpu_custom_call.1}
  #allocation0 [shape = 'u32[]', space=smem, size = 0x4, offset = 0x4, fixed_abs, tag = 'smem constant byte address 0x4 - core index']
  #allocation1 [shape = 'u32[144,128]{1,0:T(1,128)}', space=vmem, size = 0x12000, scoped, tag = 'internal scratch']
  %s0 = inlined_call_operand.vmem [shape: bf16[8,32], index: 0, kind: input, shape index: {}]
  %s1 = inlined_call_operand.vmem [shape: bf16[32,8], index: 1, kind: input, shape index: {}]
  %s2 = inlined_call_operand.vmem [shape: s32[1,8], index: 2, kind: input, shape index: {}]
  %s3 = inlined_call_operand.vmem [shape: s32[8,1], index: 3, kind: input, shape index: {}]
  %s4 = inlined_call_operand.vmem [shape: f32[8,1], index: 4, kind: output, shape index: {}]
  %s5 = sld [smem:[#allocation0]]
  $region26: #{tpu_custom_call.1} parent=0
    _
  %s7 = ssub.s32 1, %s5
  %s8 = scalar_select 0, %s7, %s5
  // Predicated region
  $region2: #{tpu_custom_call.1} parent=0 // pred_check
    _
  $region3: #{tpu_custom_call.1} parent=0 // pred_check_branch
    %10 = sbr.rel (0) target = $region5
  $region4: #{tpu_custom_call.1} parent=0 // pred_region
    _
  $region5: #{tpu_custom_call.1} parent=0 // pred_fallthru
    _
  // Predicated region
  $region6: #{tpu_custom_call.1} parent=0 // pred_check
    _
  $region7: #{tpu_custom_call.1} parent=0 // pred_check_branch
    %12 = sbr.rel (0) target = $region9
  $region8: #{tpu_custom_call.1} parent=0 // pred_region
    _
  $region9: #{tpu_custom_call.1} parent=0 // pred_fallthru
    _
  // Predicated region
  $region10: #{tpu_custom_call.1} parent=0 // pred_check
    _
  $region11: #{tpu_custom_call.1} parent=0 // pred_check_branch
    %14 = sbr.rel (0) target = $region13
  $region12: #{tpu_custom_call.1} parent=0 // pred_region
    _
  $region13: #{tpu_custom_call.1} parent=0 // pred_fallthru
    _
  // Predicated region
  $region14: #{tpu_custom_call.1} parent=0 // pred_check
    _
  $region15: #{tpu_custom_call.1} parent=0 // pred_check_branch
    %16 = sbr.rel (0) target = $region17
  $region16: #{tpu_custom_call.1} parent=0 // pred_region
    _
  $region17: #{tpu_custom_call.1} parent=0 // pred_fallthru
    _
  %v18 = vld [vmem:[%s0] sm:$0xf]
  %v19 = vld [vmem:[%s1] sm:$0xf]
  %v20 = vld [vmem:[%s1 + $0x4] sm:$0xf]
  %v21 = vld [vmem:[%s1 + $0x8] sm:$0xf]
  %v22 = vld [vmem:[%s1 + $0xc] sm:$0xf]
  %v27 = vunpack.c.l.b16 %v19
  %v28 = vunpack.c.l.b16 %v20
  %v29 = vunpack.c.l.b16 %v21
  %v30 = vunpack.c.l.b16 %v22
  %v31 = vpack.c.b16 %v28, %v27
  %v32 = vpack.c.b16 %v30, %v29
  %vm35 = vcmask 261120
  %v37 = vsel %vm35, %v18, 0
  %39 = vmatprep.subr.bf16.mxu0 0
  %40 = vmatpush1.bf16.msra.mxu0 %v31
  %41 = vmatprep.subr.bf16.mxu0 0
  %42 = vmatpush1.bf16.msra.mxu0 %v32
  %43 = vmatprep.subr.bf16.mxu0 0
  %44 = vmatpush1.bf16.msra.mxu0 0
  %45 = vmatprep.subr.bf16.mxu0 0
  %46 = vmatpush1.bf16.msra.mxu0 0
  %47 = vmatprep.subr.bf16.mxu0 0
  %48 = vmatpush1.bf16.msra.mxu0 0
  %49 = vmatprep.subr.bf16.mxu0 0
  %50 = vmatpush1.bf16.msra.mxu0 0
  %51 = vmatprep.subr.bf16.mxu0 0
  %52 = vmatpush1.bf16.msra.mxu0 0
  %53 = vmatprep.subr.bf16.mxu0 0
  %54 = vmatpush1.bf16.msra.mxu0 0
  %55 = vmatprep.subr.bf16.mxu0 0
  %56 = vmatpush1.bf16.msra.mxu0 0
  %57 = vmatprep.subr.bf16.mxu0 0
  %58 = vmatpush1.bf16.msra.mxu0 0
  %59 = vmatprep.subr.bf16.mxu0 0
  %60 = vmatpush1.bf16.msra.mxu0 0
  %61 = vmatprep.subr.bf16.mxu0 0
  %62 = vmatpush1.bf16.msra.mxu0 0
  %63 = vmatprep.subr.bf16.mxu0 0
  %64 = vmatpush1.bf16.msra.mxu0 0
  %65 = vmatprep.subr.bf16.mxu0 0
  %66 = vmatpush1.bf16.msra.mxu0 0
  %67 = vmatprep.subr.bf16.mxu0 0
  %68 = vmatpush1.bf16.msra.mxu0 0
  %69 = vmatprep.subr.bf16.mxu0 0
  %70 = vmatpush1.bf16.msra.mxu0 0
  %71 = vmatprep.mubr.bf16.mxu0 0
  %72 = vmatmul.mubr.bf16.gmra.mrb[0].mxu0 %v37
  %v73 = vpop.f32.mrb[0].mxu0
  %v74 = vadd.f32 0.0, %v73
  %v75 = vpop.f32.mrb[0].mxu0
  %v76 = vpop.f32.mrb[0].mxu0
  %v77 = vpop.f32.mrb[0].mxu0
  %78 = vdwg.mxu0
  %vm79 = vcmask 64512
  %v80 = vsel %vm79, %v74, -inf
  %81 = vmax.xlane.f32.xlu0 %v80
  %v82 = vpop.xlane.xlu0 %81
  %v83 = vsel %vm79, %v74, inf
  %84 = vmin.xlane.f32.xlu0 %v83
  %v85 = vpop.xlane.xlu0 %84
  %v86 = vsub.f32 %v74, %v85
  %v87 = vsub.f32 %v82, %v85
  %v88 = vrcp.pop %v87
  %v89 = vmul.f32 1.0, %v88
  %v90 = vmul.f32 %v86, %v89
  %s91 = smul.u32 0, 8
  %v92 = vlaneseq
  %v93 = vshrl.u32 %v92, 7
  %v94 = vstv %s91
  %v95 = vadd.s32 %v94, %v93
  %v96 = vlaneseq
  %v97 = vand.u32 %v96, 127
  %vm98 = vcmp.ne.s32.totalorder %v95, %v97
  %v99 = vld [vmem:[%s3] sm:$0xff]
  %v100 = vld [vmem:[%s2] sm:$0x1]
  %101 = vset.pattern.permute.xlu0 0
  %102 = vperm.xlu0 %101, %v99
  %v103 = vpop.permute.xlu0 %102
  %v104 = vlaneseq
  %v105 = vshrl.u32 %v104, 7
  %v106 = vsub.s32 0, %v105
  %v107 = vrot.slane %v100, %v106
  %vm108 = vcmp.eq.s32.totalorder %v103, %v107
  %vm109 = vmand %vm108, %vm98
  %v110 = vmul.f32 %v90, 1.442695
  %v111 = vpow.pop %v110
  %v112 = vsel %vm98, %v111, 0.0
  %v113 = vsel %vm79, %v112, 0.0
  %114 = vadd.xlane.f32.xlu0 %v113
  %v115 = vpop.xlane.xlu0 %114
  %v116 = vlog2.pop %v115
  %v117 = vmul.f32 %v116, 0.6931472
  %v118 = vsub.f32 %v90, %v117
  %v119 = vsel %vm109, 1.0, 0.0
  %v120 = vsel %vm79, %v119, 0.0
  %121 = vadd.xlane.f32.xlu0 %v120
  %v122 = vpop.xlane.xlu0 %121
  %v123 = vsel %vm109, %v118, 0.0
  %v124 = vsel %vm79, %v123, 0.0
  %125 = vadd.xlane.f32.xlu0 %v124
  %v126 = vpop.xlane.xlu0 %125
  %v127 = vadd.f32 %v122, 1.0
  %v128 = vrcp.pop %v127
  %v129 = vmul.f32 %v126, %v128
  %v130 = vmul.f32 %v129, -1.0
  %vm131 = vcmask 7168
  %132 = vst.msk [vmem:[%s4] sm:$0xff] %vm131, %v130
  // Predicated region
  $region18: #{tpu_custom_call.1} parent=0 // pred_check
    _
  $region19: #{tpu_custom_call.1} parent=0 // pred_check_branch
    %134 = sbr.rel (0) target = $region21
  $region20: #{tpu_custom_call.1} parent=0 // pred_region
    _
  $region21: #{tpu_custom_call.1} parent=0 // pred_fallthru
    _
  // Predicated region
  $region22: #{tpu_custom_call.1} parent=0 // pred_check
    _
  $region23: #{tpu_custom_call.1} parent=0 // pred_check_branch
    %136 = sbr.rel (0) target = $region25
  $region24: #{tpu_custom_call.1} parent=0 // pred_region
    _
  $region25: #{tpu_custom_call.1} parent=0 // pred_fallthru
    _

</llo_original>
